<compile_context>
chip_gen: v7x
topology: tpu7x:2x2x1
jax: 0.10.0
libtpu: 0.0.40
codegen_flags: <defaults>
</compile_context>

<pallas_src>
import functools

import jax
import jax.numpy as jnp
from jax.experimental import pallas as pl
from jax.experimental.pallas import tpu as pltpu


def _make_kernel(cf_distance: str):
    eps2 = 1e-24  # F.normalize(eps=1e-12), clamp applied to the squared norm

    def kernel(params_ref, ue_ref, ie_ref, sc_ref, ctrl_ref, out_ref, ctrln_ref):
        c = pl.program_id(0)           # batch half ("parallel" -> one per core)
        i = pl.program_id(1)           # batch tile within the half ("arbitrary")
        ni = pl.num_programs(1)
        tb = ue_ref.shape[1]

        alpha = params_ref[0]
        gbias = params_ref[1]
        n_valid = params_ref[2].astype(jnp.int32)

        @pl.when(i == 0)
        def _init():
            # zero this core's accumulator block; normalize control emb once.
            out_ref[...] = jnp.zeros_like(out_ref)
            cv = ctrl_ref[...]                                   # (D, 1)
            csq = jnp.sum(cv * cv, axis=0, keepdims=True)        # (1, 1)
            ctrln_ref[...] = cv * jax.lax.rsqrt(jnp.maximum(csq, eps2))

        ue = ue_ref[...]               # (D, TB)
        ie = ie_ref[...]               # (D, TB)
        ub = sc_ref[0:1, :]            # (1, TB)
        ib = sc_ref[1:2, :]            # (1, TB)
        rate = sc_ref[2:3, :]          # (1, TB)

        # mask off zero-padded batch columns in this tile
        col0 = (c * ni + i) * tb
        col = col0 + jax.lax.broadcasted_iota(jnp.int32, (1, tb), 1)
        mask = col < n_valid
        zeros = jnp.zeros((1, tb), jnp.float32)

        # squared norms computed once and reused
        ue_sq = jnp.sum(ue * ue, axis=0, keepdims=True)          # (1, TB)
        ie_sq = jnp.sum(ie * ie, axis=0, keepdims=True)          # (1, TB)

        # factual rating loss (per-column squared error; mean taken in wrapper)
        dot = jnp.sum(ue * ie, axis=0, keepdims=True)            # (1, TB)
        logits = alpha * dot + ub + ib + gbias
        pred = jax.nn.sigmoid(logits)                            # EUP
        rate_n = (rate - 1.0) * 0.25
        mse_row = jnp.where(mask, (pred - rate_n) ** 2, zeros)

        ue_sq_m = jnp.where(mask, ue_sq, zeros)
        ie_sq_m = jnp.where(mask, ie_sq, zeros)
        ub_sq = jnp.where(mask, ub * ub, zeros)
        ib_sq = jnp.where(mask, ib * ib, zeros)

        # counterfactual distance to the normalized control embedding
        ctrl_n = ctrln_ref[...]                                  # (D, 1)
        if cf_distance in ("l2", "cos"):
            inv = jax.lax.rsqrt(jnp.maximum(ie_sq, eps2))        # (1, TB), EUP
            cosb = jnp.sum(ie * ctrl_n, axis=0, keepdims=True) * inv
            if cf_distance == "cos":
                cf_row = cosb
            else:
                # ||ie_n - ctrl_n||^2 = ||ie_n||^2 + ||ctrl_n||^2 - 2 * cos
                cn_sq = jnp.sum(ctrl_n * ctrl_n, axis=0, keepdims=True)  # (1,1)
                ien_sq = ie_sq * (inv * inv)
                cf_row = ien_sq + cn_sq - 2.0 * cosb
            cf_row = jnp.where(mask, cf_row, zeros)
        elif cf_distance == "l1":
            inv = jax.lax.rsqrt(jnp.maximum(ie_sq, eps2))
            ie_n = ie * inv
            cf_row = jnp.sum(jnp.abs(ie_n - ctrl_n), axis=0, keepdims=True)
            cf_row = jnp.where(mask, cf_row, zeros)
        else:
            cf_row = zeros

        # accumulate per-lane partial sums (rows 6, 7 stay zero)
        out_ref[0:1, :] = out_ref[0:1, :] + mse_row
        out_ref[1:2, :] = out_ref[1:2, :] + ue_sq_m
        out_ref[2:3, :] = out_ref[2:3, :] + ie_sq_m
        out_ref[3:4, :] = out_ref[3:4, :] + ub_sq
        out_ref[4:5, :] = out_ref[4:5, :] + ib_sq
        out_ref[5:6, :] = out_ref[5:6, :] + cf_row

    return kernel


@functools.partial(jax.jit, static_argnames=("cf_distance", "tb"))
def cause_rate_loss(user_embs, item_embs, user_bias, item_bias,
                    alpha, global_bias, user, item, rate,
                    emb_l2rg, w_cf, *, cf_distance="l2", tb=512):
    """Loss of CausE_rate.forward. tb = batch tile width (multiple of 128)."""
    assert tb % 128 == 0
    B = user.shape[0]
    D = user_embs.shape[1]

    # ---- glue: gather + lane-dense transposed layout (fused by XLA) --------
    # TODO(synk): fuse the user/item embedding-row gathers into the kernel
    # (scalar-prefetched indices + manual make_async_copy from HBM tables) to
    # remove the gathered-embedding HBM round trip; with edim=32 the 128-byte
    # row DMAs need batching to pay off, so the gather is left to XLA here.
    ue_t = user_embs[user].T.astype(jnp.float32)                 # (D, B)
    ie_t = item_embs[item].T.astype(jnp.float32)                 # (D, B)
    sc = jnp.stack([user_bias[user, 0], item_bias[item, 0],
                    rate.astype(jnp.float32)], axis=0)           # (3, B)
    ctrl = item_embs[0:1, :].T.astype(jnp.float32)               # (D, 1)

    ni = max(1, pl.cdiv(pl.cdiv(B, tb), 2))     # batch tiles per core
    b_pad = 2 * ni * tb
    pad = b_pad - B
    ue_t = jnp.pad(ue_t, ((0, 0), (0, pad)))
    ie_t = jnp.pad(ie_t, ((0, 0), (0, pad)))
    sc = jnp.pad(sc, ((0, 0), (0, pad)))

    params = jnp.stack([alpha, global_bias, jnp.float32(B),
                        jnp.float32(0.0)]).astype(jnp.float32)   # SMEM scalars

    kernel = _make_kernel(cf_distance)
    emb_map = lambda c, i: (0, c * ni + i)

    # double-buffered input tiles + resident out block / ctrl / scratch
    itile = (2 * D + 3) * tb * 4
    fixed = (2 * 8 * tb + 3 * D * 128) * 4
    vmem_limit = int(min(max(4 * itile + fixed + (2 << 20), 4 << 20), 32 << 20))

    partials = pl.pallas_call(
        kernel,
        out_shape=jax.ShapeDtypeStruct((2, 8, tb), jnp.float32),
        grid_spec=pltpu.PrefetchScalarGridSpec(
            num_scalar_prefetch=0,
            grid=(2, ni),
            in_specs=[
                pl.BlockSpec(memory_space=pltpu.MemorySpace.SMEM),  # params (4,)
                pl.BlockSpec((D, tb), emb_map),                     # user_emb^T
                pl.BlockSpec((D, tb), emb_map),                     # item_emb^T
                pl.BlockSpec((3, tb), emb_map),                     # [ub; ib; rate]
                pl.BlockSpec((D, 1), lambda c, i: (0, 0)),          # control emb
            ],
            out_specs=pl.BlockSpec((None, 8, tb), lambda c, i: (c, 0, 0)),
            scratch_shapes=[pltpu.VMEM((D, 1), jnp.float32)],       # normalized ctrl
        ),
        compiler_params=pltpu.CompilerParams(
            dimension_semantics=("parallel", "arbitrary"),
            vmem_limit_bytes=vmem_limit,
        ),
        cost_estimate=pl.CostEstimate(
            flops=int(12 * B * D + 32 * B),
            transcendentals=int(2 * B),
            bytes_accessed=int(4 * ((2 * D + 3) * b_pad + D + 2 * 8 * tb + 4)),
        ),
    )(params, ue_t, ie_t, sc, ctrl)

    # ---- tiny final combine: (2, 8, TB) per-core/per-lane partials -> loss --
    sums = jnp.sum(partials, axis=(0, 2))        # (8,)
    bf = jnp.float32(B)
    mse = sums[0] / bf
    # NOTE: biases are 1-D after .squeeze() in torch, so their term is a batch SUM.
    emb_loss = emb_l2rg * (sums[1] / bf + sums[2] / bf + sums[3] + sums[4])
    if cf_distance == "l2":
        cf = sums[5] / (bf * D)
    elif cf_distance == "l1":
        cf = sums[5] / (bf * D)
    elif cf_distance == "cos":
        cf = sums[5] / bf
    else:
        cf = jnp.float32(0.0)
    return mse + emb_loss + w_cf * cf


def reference_loss(user_embs, item_embs, user_bias, item_bias, alpha, gbias,
                   user, item, rate, emb_l2rg, w_cf, cf_distance):
    """Pure-JAX reference mirroring the PyTorch forward."""
    ue = user_embs[user]
    ie = item_embs[item]
    ub = user_bias[user, 0]
    ib = item_bias[item, 0]
    logits = alpha * jnp.sum(ue * ie, -1) + ub + ib + gbias
    pred = jax.nn.sigmoid(logits)
    r = (rate - 1.0) / 4.0
    mse = jnp.mean((pred - r) ** 2)
    emb = emb_l2rg * (jnp.mean(jnp.sum(ue ** 2, -1)) + jnp.mean(jnp.sum(ie ** 2, -1))
                      + jnp.sum(ub ** 2) + jnp.sum(ib ** 2))
    eps = 1e-12
    cvec = item_embs[0]
    cn = cvec / jnp.maximum(jnp.linalg.norm(cvec), eps)
    itn = ie / jnp.maximum(jnp.linalg.norm(ie, axis=-1, keepdims=True), eps)
    if cf_distance == "l2":
        cf = jnp.mean((itn - cn[None, :]) ** 2)
    elif cf_distance == "l1":
        cf = jnp.mean(jnp.abs(itn - cn[None, :]))
    elif cf_distance == "cos":
        cf = jnp.mean(jnp.sum(itn * cn[None, :], -1))
    else:
        cf = jnp.float32(0.0)
    return mse + emb + w_cf * cf


if __name__ == "__main__":
    # Small synthetic config consistent with the module's __init__.
    user_num, item_num, edim = 50, 60, 32
    batch = 8

    key = jax.random.PRNGKey(0)
    k_ue, k_ie, k_ub, k_ib, k_u, k_i, k_r = jax.random.split(key, 7)

    user_embs = jax.random.uniform(k_ue, (user_num, edim), jnp.float32,
                                   -0.5 / user_num, 0.5 / user_num)
    item_embs = jax.random.uniform(k_ie, (item_num, edim), jnp.float32,
                                   -0.5 / item_num, 0.5 / item_num)
    user_bias = jax.random.uniform(k_ub, (user_num, 1), jnp.float32,
                                   -0.5 / user_num, 0.5 / user_num)
    item_bias = jax.random.uniform(k_ib, (item_num, 1), jnp.float32,
                                   -0.5 / item_num, 0.5 / item_num)
    alpha = jnp.float32(1e-6)
    global_bias = jnp.float32(0.0)
    emb_l2rg = jnp.float32(1e-4)
    w_cf = jnp.float32(0.1)

    # Batch: (user, u_ir, nbr, item, rate); u_ir / nbr are unused in forward.
    user = jax.random.randint(k_u, (batch,), 1, user_num)
    item = jax.random.randint(k_i, (batch,), 1, item_num)
    rate = jax.random.randint(k_r, (batch,), 1, 6).astype(jnp.float32)

    for cfd in ("l2", "l1", "cos"):
        loss = cause_rate_loss(user_embs, item_embs, user_bias, item_bias,
                               alpha, global_bias, user, item, rate,
                               emb_l2rg, w_cf, cf_distance=cfd, tb=128)
        loss = jax.block_until_ready(loss)
        ref = reference_loss(user_embs, item_embs, user_bias, item_bias,
                             alpha, global_bias, user, item, rate,
                             emb_l2rg, w_cf, cfd)
        assert jnp.allclose(loss, ref, rtol=1e-4, atol=1e-6), (cfd, loss, ref)

    print("KERNEL_OK")
</pallas_src>

<mosaic_0001>
module attributes {stable_mosaic.version = 11 : i64} {
  func.func @kernel(%arg0: i32, %arg1: i32, %arg2: memref<4xf32, #tpu.memory_space<smem>>, %arg3: memref<32x128xf32, #tpu.memory_space<vmem>>, %arg4: memref<32x128xf32, #tpu.memory_space<vmem>>, %arg5: memref<3x128xf32, #tpu.memory_space<vmem>>, %arg6: memref<32x1xf32, #tpu.memory_space<vmem>>, %arg7: memref<1x8x128xf32, #tpu.memory_space<vmem>>, %arg8: memref<32x1xf32, #tpu.memory_space<vmem>>) attributes {dimension_semantics = [#tpu.dimension_semantics<parallel>, #tpu.dimension_semantics<arbitrary>], iteration_bounds = array<i64: 2, 1>, scalar_prefetch = 0 : i64, scratch_operands = 1 : i64, tpu.core_type = #tpu.core_type<tc>, window_params = [{transform_indices = @transform_0, window_bounds = array<i64: 4>}, {transform_indices = @transform_1, window_bounds = array<i64: 32, 128>}, {transform_indices = @transform_2, window_bounds = array<i64: 32, 128>}, {transform_indices = @transform_3, window_bounds = array<i64: 3, 128>}, {pipeline_mode = #tpu.pipeline_mode<synchronous>, transform_indices = @transform_4, window_bounds = array<i64: 32, 1>}, {transform_indices = @transform_5, window_bounds = array<i64: 1, 8, 128>}]} {
    %c0 = arith.constant 0 : index
    %0 = memref.load %arg2[%c0] : memref<4xf32, #tpu.memory_space<smem>>
    %c1 = arith.constant 1 : index
    %1 = memref.load %arg2[%c1] : memref<4xf32, #tpu.memory_space<smem>>
    %c2 = arith.constant 2 : index
    %2 = memref.load %arg2[%c2] : memref<4xf32, #tpu.memory_space<smem>>
    %3 = arith.fptosi %2 : f32 to i32
    %c0_i32 = arith.constant 0 : i32
    %4 = arith.cmpi eq, %arg1, %c0_i32 : i32
    %5 = arith.extui %4 : i1 to i32
    %c0_i32_0 = arith.constant 0 : i32
    %6 = arith.cmpi ne, %5, %c0_i32_0 : i32
    scf.if %6 {
      %cst_56 = arith.constant 0.000000e+00 : f32
      %110 = vector.broadcast %cst_56 : f32 to vector<8x128xf32>
      %c0_57 = arith.constant 0 : index
      %c0_58 = arith.constant 0 : index
      %c0_59 = arith.constant 0 : index
      %111 = vector.load %arg7[%c0_57, %c0_58, %c0_59] : memref<1x8x128xf32, #tpu.memory_space<vmem>>, vector<1x8x128xf32>
      %112 = vector.shape_cast %111 : vector<1x8x128xf32> to vector<8x128xf32>
      %113 = vector.shape_cast %110 : vector<8x128xf32> to vector<1x8x128xf32>
      tpu.vector_store %arg7[%c0_57, %c0_58, %c0_59], %113 {strides = array<i32>} : memref<1x8x128xf32, #tpu.memory_space<vmem>>, vector<1x8x128xf32>,
      %c0_60 = arith.constant 0 : index
      %c0_61 = arith.constant 0 : index
      %114 = vector.load %arg6[%c0_60, %c0_61] : memref<32x1xf32, #tpu.memory_space<vmem>>, vector<32x1xf32>
      %115 = arith.mulf %114, %114 : vector<32x1xf32>
      %cst_62 = arith.constant dense<0.000000e+00> : vector<1xf32>
      %116 = vector.multi_reduction <add>, %115, %cst_62 [0] : vector<32x1xf32> to vector<1xf32>
      %117 = vector.shape_cast %116 : vector<1xf32> to vector<1x1xf32>
      %cst_63 = arith.constant 1.000000e-24 : f32
      %118 = vector.broadcast %cst_63 : f32 to vector<1x1xf32>
      %119 = arith.maximumf %117, %118 : vector<1x1xf32>
      %120 = math.rsqrt %119 : vector<1x1xf32>
      %121 = vector.broadcast %120 : vector<1x1xf32> to vector<32x1xf32>
      %122 = arith.mulf %114, %121 : vector<32x1xf32>
      %c0_64 = arith.constant 0 : index
      %c0_65 = arith.constant 0 : index
      %123 = vector.load %arg8[%c0_64, %c0_65] : memref<32x1xf32, #tpu.memory_space<vmem>>, vector<32x1xf32>
      tpu.vector_store %arg8[%c0_64, %c0_65], %122 {strides = array<i32>} : memref<32x1xf32, #tpu.memory_space<vmem>>, vector<32x1xf32>,
    } else {
    }
    %c0_1 = arith.constant 0 : index
    %c0_2 = arith.constant 0 : index
    %7 = vector.load %arg3[%c0_1, %c0_2] : memref<32x128xf32, #tpu.memory_space<vmem>>, vector<32x128xf32>
    %c0_3 = arith.constant 0 : index
    %c0_4 = arith.constant 0 : index
    %8 = vector.load %arg4[%c0_3, %c0_4] : memref<32x128xf32, #tpu.memory_space<vmem>>, vector<32x128xf32>
    %c0_5 = arith.constant 0 : index
    %c0_6 = arith.constant 0 : index
    %9 = vector.load %arg5[%c0_5, %c0_6] : memref<3x128xf32, #tpu.memory_space<vmem>>, vector<1x128xf32>
    %c1_7 = arith.constant 1 : index
    %c0_8 = arith.constant 0 : index
    %10 = vector.load %arg5[%c1_7, %c0_8] : memref<3x128xf32, #tpu.memory_space<vmem>>, vector<1x128xf32>
    %c2_9 = arith.constant 2 : index
    %c0_10 = arith.constant 0 : index
    %11 = vector.load %arg5[%c2_9, %c0_10] : memref<3x128xf32, #tpu.memory_space<vmem>>, vector<1x128xf32>
    %c1_i32 = arith.constant 1 : i32
    %12 = arith.muli %arg0, %c1_i32 : i32
    %13 = arith.addi %12, %arg1 : i32
    %c128_i32 = arith.constant 128 : i32
    %14 = arith.muli %13, %c128_i32 : i32
    %15 = tpu.iota {dimensions = array<i32: 1>} : vector<1x128xi32>
    %16 = vector.broadcast %14 : i32 to vector<1x128xi32>
    %17 = arith.addi %16, %15 : vector<1x128xi32>
    %18 = vector.broadcast %3 : i32 to vector<1x128xi32>
    %19 = arith.cmpi slt, %17, %18 : vector<1x128xi32>
    %cst = arith.constant 0.000000e+00 : f32
    %20 = vector.broadcast %cst : f32 to vector<1x128xf32>
    %21 = arith.mulf %7, %7 : vector<32x128xf32>
    %cst_11 = arith.constant dense<0.000000e+00> : vector<128xf32>
    %22 = vector.multi_reduction <add>, %21, %cst_11 [0] : vector<32x128xf32> to vector<128xf32>
    %23 = vector.shape_cast %22 : vector<128xf32> to vector<1x128xf32>
    %24 = arith.mulf %8, %8 : vector<32x128xf32>
    %cst_12 = arith.constant dense<0.000000e+00> : vector<128xf32>
    %25 = vector.multi_reduction <add>, %24, %cst_12 [0] : vector<32x128xf32> to vector<128xf32>
    %26 = vector.shape_cast %25 : vector<128xf32> to vector<1x128xf32>
    %27 = arith.mulf %7, %8 : vector<32x128xf32>
    %cst_13 = arith.constant dense<0.000000e+00> : vector<128xf32>
    %28 = vector.multi_reduction <add>, %27, %cst_13 [0] : vector<32x128xf32> to vector<128xf32>
    %29 = vector.shape_cast %28 : vector<128xf32> to vector<1x128xf32>
    %30 = vector.broadcast %0 : f32 to vector<1x128xf32>
    %31 = arith.mulf %30, %29 : vector<1x128xf32>
    %32 = arith.addf %31, %9 : vector<1x128xf32>
    %33 = arith.addf %32, %10 : vector<1x128xf32>
    %34 = vector.broadcast %1 : f32 to vector<1x128xf32>
    %35 = arith.addf %33, %34 : vector<1x128xf32>
    %36 = arith.negf %35 : vector<1x128xf32>
    %37 = math.exp %36 : vector<1x128xf32>
    %cst_14 = arith.constant 1.000000e+00 : f32
    %38 = vector.broadcast %cst_14 : f32 to vector<1x128xf32>
    %39 = arith.addf %38, %37 : vector<1x128xf32>
    %40 = arith.divf %38, %39 : vector<1x128xf32>
    %cst_15 = arith.constant 1.000000e+00 : f32
    %41 = vector.broadcast %cst_15 : f32 to vector<1x128xf32>
    %42 = arith.subf %11, %41 : vector<1x128xf32>
    %cst_16 = arith.constant 2.500000e-01 : f32
    %43 = vector.broadcast %cst_16 : f32 to vector<1x128xf32>
    %44 = arith.mulf %42, %43 : vector<1x128xf32>
    %45 = arith.subf %40, %44 : vector<1x128xf32>
    %46 = arith.mulf %45, %45 : vector<1x128xf32>
    %47 = arith.select %19, %46, %20 : vector<1x128xi1>, vector<1x128xf32>
    %48 = arith.select %19, %23, %20 : vector<1x128xi1>, vector<1x128xf32>
    %49 = arith.select %19, %26, %20 : vector<1x128xi1>, vector<1x128xf32>
    %50 = arith.mulf %9, %9 : vector<1x128xf32>
    %51 = arith.select %19, %50, %20 : vector<1x128xi1>, vector<1x128xf32>
    %52 = arith.mulf %10, %10 : vector<1x128xf32>
    %53 = arith.select %19, %52, %20 : vector<1x128xi1>, vector<1x128xf32>
    %c0_17 = arith.constant 0 : index
    %c0_18 = arith.constant 0 : index
    %54 = vector.load %arg8[%c0_17, %c0_18] : memref<32x1xf32, #tpu.memory_space<vmem>>, vector<32x1xf32>
    %cst_19 = arith.constant 1.000000e-24 : f32
    %55 = vector.broadcast %cst_19 : f32 to vector<1x128xf32>
    %56 = arith.maximumf %26, %55 : vector<1x128xf32>
    %57 = math.rsqrt %56 : vector<1x128xf32>
    %58 = vector.broadcast %54 : vector<32x1xf32> to vector<32x128xf32>
    %59 = arith.mulf %8, %58 : vector<32x128xf32>
    %cst_20 = arith.constant dense<0.000000e+00> : vector<128xf32>
    %60 = vector.multi_reduction <add>, %59, %cst_20 [0] : vector<32x128xf32> to vector<128xf32>
    %61 = vector.shape_cast %60 : vector<128xf32> to vector<1x128xf32>
    %62 = arith.mulf %61, %57 : vector<1x128xf32>
    %63 = arith.mulf %54, %54 : vector<32x1xf32>
    %cst_21 = arith.constant dense<0.000000e+00> : vector<1xf32>
    %64 = vector.multi_reduction <add>, %63, %cst_21 [0] : vector<32x1xf32> to vector<1xf32>
    %65 = vector.shape_cast %64 : vector<1xf32> to vector<1x1xf32>
    %66 = arith.mulf %57, %57 : vector<1x128xf32>
    %67 = arith.mulf %26, %66 : vector<1x128xf32>
    %68 = vector.broadcast %65 : vector<1x1xf32> to vector<1x128xf32>
    %69 = arith.addf %67, %68 : vector<1x128xf32>
    %cst_22 = arith.constant 2.000000e+00 : f32
    %70 = vector.broadcast %cst_22 : f32 to vector<1x128xf32>
    %71 = arith.mulf %70, %62 : vector<1x128xf32>
    %72 = arith.subf %69, %71 : vector<1x128xf32>
    %73 = arith.select %19, %72, %20 : vector<1x128xi1>, vector<1x128xf32>
    %c0_23 = arith.constant 0 : index
    %c0_24 = arith.constant 0 : index
    %c0_25 = arith.constant 0 : index
    %74 = vector.load %arg7[%c0_23, %c0_24, %c0_25] : memref<1x8x128xf32, #tpu.memory_space<vmem>>, vector<1x1x128xf32>
    %75 = vector.shape_cast %74 : vector<1x1x128xf32> to vector<1x128xf32>
    %76 = arith.addf %75, %47 : vector<1x128xf32>
    %c0_26 = arith.constant 0 : index
    %c0_27 = arith.constant 0 : index
    %c0_28 = arith.constant 0 : index
    %77 = vector.load %arg7[%c0_26, %c0_27, %c0_28] : memref<1x8x128xf32, #tpu.memory_space<vmem>>, vector<1x1x128xf32>
    %78 = vector.shape_cast %77 : vector<1x1x128xf32> to vector<1x128xf32>
    %79 = vector.shape_cast %76 : vector<1x128xf32> to vector<1x1x128xf32>
    tpu.vector_store %arg7[%c0_26, %c0_27, %c0_28], %79 {strides = array<i32>} : memref<1x8x128xf32, #tpu.memory_space<vmem>>, vector<1x1x128xf32>,
    %c0_29 = arith.constant 0 : index
    %c1_30 = arith.constant 1 : index
    %c0_31 = arith.constant 0 : index
    %80 = vector.load %arg7[%c0_29, %c1_30, %c0_31] : memref<1x8x128xf32, #tpu.memory_space<vmem>>, vector<1x1x128xf32>
    %81 = vector.shape_cast %80 : vector<1x1x128xf32> to vector<1x128xf32>
    %82 = arith.addf %81, %48 : vector<1x128xf32>
    %c0_32 = arith.constant 0 : index
    %c1_33 = arith.constant 1 : index
    %c0_34 = arith.constant 0 : index
    %83 = vector.load %arg7[%c0_32, %c1_33, %c0_34] : memref<1x8x128xf32, #tpu.memory_space<vmem>>, vector<1x1x128xf32>
    %84 = vector.shape_cast %83 : vector<1x1x128xf32> to vector<1x128xf32>
    %85 = vector.shape_cast %82 : vector<1x128xf32> to vector<1x1x128xf32>
    tpu.vector_store %arg7[%c0_32, %c1_33, %c0_34], %85 {strides = array<i32>} : memref<1x8x128xf32, #tpu.memory_space<vmem>>, vector<1x1x128xf32>,
    %c0_35 = arith.constant 0 : index
    %c2_36 = arith.constant 2 : index
    %c0_37 = arith.constant 0 : index
    %86 = vector.load %arg7[%c0_35, %c2_36, %c0_37] : memref<1x8x128xf32, #tpu.memory_space<vmem>>, vector<1x1x128xf32>
    %87 = vector.shape_cast %86 : vector<1x1x128xf32> to vector<1x128xf32>
    %88 = arith.addf %87, %49 : vector<1x128xf32>
    %c0_38 = arith.constant 0 : index
    %c2_39 = arith.constant 2 : index
    %c0_40 = arith.constant 0 : index
    %89 = vector.load %arg7[%c0_38, %c2_39, %c0_40] : memref<1x8x128xf32, #tpu.memory_space<vmem>>, vector<1x1x128xf32>
    %90 = vector.shape_cast %89 : vector<1x1x128xf32> to vector<1x128xf32>
    %91 = vector.shape_cast %88 : vector<1x128xf32> to vector<1x1x128xf32>
    tpu.vector_store %arg7[%c0_38, %c2_39, %c0_40], %91 {strides = array<i32>} : memref<1x8x128xf32, #tpu.memory_space<vmem>>, vector<1x1x128xf32>,
    %c0_41 = arith.constant 0 : index
    %c3 = arith.constant 3 : index
    %c0_42 = arith.constant 0 : index
    %92 = vector.load %arg7[%c0_41, %c3, %c0_42] : memref<1x8x128xf32, #tpu.memory_space<vmem>>, vector<1x1x128xf32>
    %93 = vector.shape_cast %92 : vector<1x1x128xf32> to vector<1x128xf32>
    %94 = arith.addf %93, %51 : vector<1x128xf32>
    %c0_43 = arith.constant 0 : index
    %c3_44 = arith.constant 3 : index
    %c0_45 = arith.constant 0 : index
    %95 = vector.load %arg7[%c0_43, %c3_44, %c0_45] : memref<1x8x128xf32, #tpu.memory_space<vmem>>, vector<1x1x128xf32>
    %96 = vector.shape_cast %95 : vector<1x1x128xf32> to vector<1x128xf32>
    %97 = vector.shape_cast %94 : vector<1x128xf32> to vector<1x1x128xf32>
    tpu.vector_store %arg7[%c0_43, %c3_44, %c0_45], %97 {strides = array<i32>} : memref<1x8x128xf32, #tpu.memory_space<vmem>>, vector<1x1x128xf32>,
    %c0_46 = arith.constant 0 : index
    %c4 = arith.constant 4 : index
    %c0_47 = arith.constant 0 : index
    %98 = vector.load %arg7[%c0_46, %c4, %c0_47] : memref<1x8x128xf32, #tpu.memory_space<vmem>>, vector<1x1x128xf32>
    %99 = vector.shape_cast %98 : vector<1x1x128xf32> to vector<1x128xf32>
    %100 = arith.addf %99, %53 : vector<1x128xf32>
    %c0_48 = arith.constant 0 : index
    %c4_49 = arith.constant 4 : index
    %c0_50 = arith.constant 0 : index
    %101 = vector.load %arg7[%c0_48, %c4_49, %c0_50] : memref<1x8x128xf32, #tpu.memory_space<vmem>>, vector<1x1x128xf32>
    %102 = vector.shape_cast %101 : vector<1x1x128xf32> to vector<1x128xf32>
    %103 = vector.shape_cast %100 : vector<1x128xf32> to vector<1x1x128xf32>
    tpu.vector_store %arg7[%c0_48, %c4_49, %c0_50], %103 {strides = array<i32>} : memref<1x8x128xf32, #tpu.memory_space<vmem>>, vector<1x1x128xf32>,
    %c0_51 = arith.constant 0 : index
    %c5 = arith.constant 5 : index
    %c0_52 = arith.constant 0 : index
    %104 = vector.load %arg7[%c0_51, %c5, %c0_52] : memref<1x8x128xf32, #tpu.memory_space<vmem>>, vector<1x1x128xf32>
    %105 = vector.shape_cast %104 : vector<1x1x128xf32> to vector<1x128xf32>
    %106 = arith.addf %105, %73 : vector<1x128xf32>
    %c0_53 = arith.constant 0 : index
    %c5_54 = arith.constant 5 : index
    %c0_55 = arith.constant 0 : index
    %107 = vector.load %arg7[%c0_53, %c5_54, %c0_55] : memref<1x8x128xf32, #tpu.memory_space<vmem>>, vector<1x1x128xf32>
    %108 = vector.shape_cast %107 : vector<1x1x128xf32> to vector<1x128xf32>
    %109 = vector.shape_cast %106 : vector<1x128xf32> to vector<1x1x128xf32>
    tpu.vector_store %arg7[%c0_53, %c5_54, %c0_55], %109 {strides = array<i32>} : memref<1x8x128xf32, #tpu.memory_space<vmem>>, vector<1x1x128xf32>,
    return
  }
  func.func @transform_0(%arg0: i32, %arg1: i32) -> i32 {
    %c0_i32 = arith.constant 0 : i32
    %c0_i32_0 = arith.constant 0 : i32
    return %c0_i32 : i32
  }
  func.func @transform_1(%arg0: i32, %arg1: i32) -> (i32, i32) {
    %c1_i32 = arith.constant 1 : i32
    %0 = arith.muli %arg0, %c1_i32 : i32
    %1 = arith.addi %0, %arg1 : i32
    %c0_i32 = arith.constant 0 : i32
    %c0_i32_0 = arith.constant 0 : i32
    return %c0_i32, %1 : i32, i32
  }
  func.func @transform_2(%arg0: i32, %arg1: i32) -> (i32, i32) {
    %c1_i32 = arith.constant 1 : i32
    %0 = arith.muli %arg0, %c1_i32 : i32
    %1 = arith.addi %0, %arg1 : i32
    %c0_i32 = arith.constant 0 : i32
    %c0_i32_0 = arith.constant 0 : i32
    return %c0_i32, %1 : i32, i32
  }
  func.func @transform_3(%arg0: i32, %arg1: i32) -> (i32, i32) {
    %c1_i32 = arith.constant 1 : i32
    %0 = arith.muli %arg0, %c1_i32 : i32
    %1 = arith.addi %0, %arg1 : i32
    %c0_i32 = arith.constant 0 : i32
    %c0_i32_0 = arith.constant 0 : i32
    return %c0_i32, %1 : i32, i32
  }
  func.func @transform_4(%arg0: i32, %arg1: i32) -> (i32, i32) {
    %c0_i32 = arith.constant 0 : i32
    %c0_i32_0 = arith.constant 0 : i32
    %c0_i32_1 = arith.constant 0 : i32
    return %c0_i32, %c0_i32_0 : i32, i32
  }
  func.func @transform_5(%arg0: i32, %arg1: i32) -> (i32, i32, i32) {
    %c0_i32 = arith.constant 0 : i32
    %c0_i32_0 = arith.constant 0 : i32
    %c0_i32_1 = arith.constant 0 : i32
    return %arg0, %c0_i32, %c0_i32_0 : i32, i32, i32
  }
}

</mosaic_0001>

<llo_original>
// kernel: cause_rate_loss.1
$region0: #{cause_rate_loss.1}
  #allocation0 [shape = 'u32[]', space=smem, size = 0x4, offset = 0x4, fixed_abs, tag = 'smem constant byte address 0x4 - core index']
  #allocation1 [shape = 'u32[144,128]{1,0:T(1,128)}', space=vmem, size = 0x12000, scoped, tag = 'internal scratch']
  #allocation2 [shape = 'f32[32,1]{1,0:T(8,128)}', space=vmem, size = 0x4000, scoped, tag = 'scratch operand']
  %s0 = inlined_call_operand.vmem [shape: f32[4], index: 0, kind: input, shape index: {}]
  %s1 = inlined_call_operand.vmem [shape: f32[32,256], index: 1, kind: input, shape index: {}]
  %s2 = inlined_call_operand.vmem [shape: f32[32,256], index: 2, kind: input, shape index: {}]
  %s3 = inlined_call_operand.vmem [shape: f32[3,256], index: 3, kind: input, shape index: {}]
  %s4 = inlined_call_operand.vmem [shape: f32[32,1], index: 4, kind: input, shape index: {}]
  %s5 = inlined_call_operand.vmem [shape: f32[2,8,128], index: 5, kind: output, shape index: {}]
  %s6 = sld [smem:[#allocation0]]
  $region137: #{cause_rate_loss.1} parent=0
    _
  %s8 = ssub.s32 1, %s6
  %s9 = scalar_select 0, %s8, %s6
  $region1: #{cause_rate_loss.1} parent=0
    #allocation3 [shape = 'u8[512]{0}', space=smem, size = 0x200, scoped, tag = 'input window, operand 0, single buffered']
    #allocation4 [shape = 's32[2]{0}', space=sflag, size = 0x8, scoped, tag = 'scoped memory for cause_rate_loss.1']
    #allocation5 [shape = 'u8[32768]{0}', space=vmem, size = 0x8000, scoped, tag = 'input window, operand 1']
    #allocation6 [shape = 'u8[32768]{0}', space=vmem, size = 0x8000, scoped, tag = 'input window, operand 2']
    %10 = vsyncpa [#allocation4], 0
    loop: start=0, step=1, limit=4
    $region2: #{cause_rate_loss.1} parent=1 // loop_pre_header
      _
    $region3: #{cause_rate_loss.1} parent=1 // loop_header
      %s12 = sphi 0, %s16
      %p13 = scmp.ge.s32.totalorder %s12, 4
      %s19 = sphi 0, %s31
      %s20 = sphi 0, %s27
      %s21 = sphi 0, %s19
      %s22 = sphi 0, %s20
      %s23 = sphi 0, %s21
      %s24 = sphi 0, %s22
      %s32 = sphi 0, %s32
      %s34 = sphi 0, %s32
      %s35 = sphi 0, %s34
      %s49 = sphi 0, %s35
      %s57 = sphi 0, %s59
      %s60 = sphi 0, %s57
      %s61 = sphi 0, %s60
      %s77 = sphi 0, %s61
      %s85 = sphi 0, %s87
      %s88 = sphi 0, %s85
      %s89 = sphi 0, %s88
      %s105 = sphi 0, %s89
      %s113 = sphi 0, %s115
      %s116 = sphi 0, %s113
      %s117 = sphi 0, %s116
      %s133 = sphi 0, %s117
      %s137 = sphi 0, %s137
      %s139 = sphi 0, %s137
      %s140 = sphi 0, %s139
      %s154 = sphi 0, %s140
      %s160 = sphi 0, %s162
      %s163 = sphi 0, %s160
      %s164 = sphi 0, %s163
      %s180 = sphi 0, %s164
    $region4: #{cause_rate_loss.1} parent=1 // loop_header_branch
      %15 = sbr.rel (%p13) target = $region8
    $region5: #{cause_rate_loss.1} parent=1 // loop_body
      %s17 = ssub.s32 %s12, 1
      %s18 = ssub.s32 %s12, 2
      %s25 = sadd.s32 1, %s20
      %p26 = scmp.ge.s32.totalorder %s25, 1
      %s27 = scalar_select %p26, 0, %s25
      %s28 = sadd.s32 1, %s19
      %s29 = scalar_select %p26, %s28, %s19
      %p30 = scmp.ge.s32.totalorder %s29, 2
      %s31 = scalar_select %p30, 0, %s29
      %s33 = sadd.s32 %s32, 1
      %p36 = scmp.eq.s32.totalorder %s12, 1
      %p37 = scmp.ne.s32.totalorder %s32, %s34
      %p38 = scmp.eq.s32.totalorder %s12, 0
      %p39 = por %p37, %p38
      %p40 = scmp.ne.s32.totalorder %s32, %s34
      %p41 = scmp.eq.s32.totalorder %s17, 1
      %p42 = por %p40, %p41
      %p43 = scmp.ne.s32.totalorder %s34, %s35
      %p44 = scmp.eq.s32.totalorder %s17, 0
      %p45 = por %p43, %p44
      %p46 = scmp.ne.s32.totalorder %s34, %s35
      %p47 = scmp.eq.s32.totalorder %s18, 1
      %p48 = por %p46, %p47
      %p50 = scmp.ne.s32.totalorder %s35, %s49
      %p51 = scmp.eq.s32.totalorder %s18, 0
      %p52 = por %p50, %p51
      %s53 = sadd.s32 %s19, %s20
      %s54 = sadd.s32 %s31, %s27
      %s55 = ssub.s32 %s53, %s54
      %p56 = scmp.eq.s32.totalorder %s55, 0
      %s58 = sadd.s32 %s57, 1
      %s59 = scalar_select %p56, %s57, %s58
      %p62 = pneg %p56
      %p63 = scmp.eq.s32.totalorder %s12, 1
      %p64 = por %p62, %p63
      %p65 = scmp.ne.s32.totalorder %s57, %s60
      %p66 = scmp.eq.s32.totalorder %s12, 0
      %p67 = por %p65, %p66
      %p68 = scmp.ne.s32.totalorder %s57, %s60
      %p69 = scmp.eq.s32.totalorder %s17, 1
      %p70 = por %p68, %p69
      %p71 = scmp.ne.s32.totalorder %s60, %s61
      %p72 = scmp.eq.s32.totalorder %s17, 0
      %p73 = por %p71, %p72
      %p74 = scmp.ne.s32.totalorder %s60, %s61
      %p75 = scmp.eq.s32.totalorder %s18, 1
      %p76 = por %p74, %p75
      %p78 = scmp.ne.s32.totalorder %s61, %s77
      %p79 = scmp.eq.s32.totalorder %s18, 0
      %p80 = por %p78, %p79
      %s81 = sadd.s32 %s19, %s20
      %s82 = sadd.s32 %s31, %s27
      %s83 = ssub.s32 %s81, %s82
      %p84 = scmp.eq.s32.totalorder %s83, 0
      %s86 = sadd.s32 %s85, 1
      %s87 = scalar_select %p84, %s85, %s86
      %p90 = pneg %p84
      %p91 = scmp.eq.s32.totalorder %s12, 1
      %p92 = por %p90, %p91
      %p93 = scmp.ne.s32.totalorder %s85, %s88
      %p94 = scmp.eq.s32.totalorder %s12, 0
      %p95 = por %p93, %p94
      %p96 = scmp.ne.s32.totalorder %s85, %s88
      %p97 = scmp.eq.s32.totalorder %s17, 1
      %p98 = por %p96, %p97
      %p99 = scmp.ne.s32.totalorder %s88, %s89
      %p100 = scmp.eq.s32.totalorder %s17, 0
      %p101 = por %p99, %p100
      %p102 = scmp.ne.s32.totalorder %s88, %s89
      %p103 = scmp.eq.s32.totalorder %s18, 1
      %p104 = por %p102, %p103
      %p106 = scmp.ne.s32.totalorder %s89, %s105
      %p107 = scmp.eq.s32.totalorder %s18, 0
      %p108 = por %p106, %p107
      %s109 = sadd.s32 %s19, %s20
      %s110 = sadd.s32 %s31, %s27
      %s111 = ssub.s32 %s109, %s110
      %p112 = scmp.eq.s32.totalorder %s111, 0
      %s114 = sadd.s32 %s113, 1
      %s115 = scalar_select %p112, %s113, %s114
      %p118 = pneg %p112
      %p119 = scmp.eq.s32.totalorder %s12, 1
      %p120 = por %p118, %p119
      %p121 = scmp.ne.s32.totalorder %s113, %s116
      %p122 = scmp.eq.s32.totalorder %s12, 0
      %p123 = por %p121, %p122
      %p124 = scmp.ne.s32.totalorder %s113, %s116
      %p125 = scmp.eq.s32.totalorder %s17, 1
      %p126 = por %p124, %p125
      %p127 = scmp.ne.s32.totalorder %s116, %s117
      %p128 = scmp.eq.s32.totalorder %s17, 0
      %p129 = por %p127, %p128
      %p130 = scmp.ne.s32.totalorder %s116, %s117
      %p131 = scmp.eq.s32.totalorder %s18, 1
      %p132 = por %p130, %p131
      %p134 = scmp.ne.s32.totalorder %s117, %s133
      %p135 = scmp.eq.s32.totalorder %s18, 0
      %p136 = por %p134, %p135
      %s138 = sadd.s32 %s137, 1
      %p141 = scmp.eq.s32.totalorder %s12, 1
      %p142 = scmp.ne.s32.totalorder %s137, %s139
      %p143 = scmp.eq.s32.totalorder %s12, 0
      %p144 = por %p142, %p143
      %p145 = scmp.ne.s32.totalorder %s137, %s139
      %p146 = scmp.eq.s32.totalorder %s17, 1
      %p147 = por %p145, %p146
      %p148 = scmp.ne.s32.totalorder %s139, %s140
      %p149 = scmp.eq.s32.totalorder %s17, 0
      %p150 = por %p148, %p149
      %p151 = scmp.ne.s32.totalorder %s139, %s140
      %p152 = scmp.eq.s32.totalorder %s18, 1
      %p153 = por %p151, %p152
      %p155 = scmp.ne.s32.totalorder %s140, %s154
      %p156 = scmp.eq.s32.totalorder %s18, 0
      %p157 = por %p155, %p156
      %s158 = ssub.s32 %s19, %s31
      %p159 = scmp.eq.s32.totalorder %s158, 0
      %s161 = sadd.s32 %s160, 1
      %s162 = scalar_select %p159, %s160, %s161
      %p165 = pneg %p159
      %p166 = scmp.eq.s32.totalorder %s12, 1
      %p167 = por %p165, %p166
      %p168 = scmp.ne.s32.totalorder %s160, %s163
      %p169 = scmp.eq.s32.totalorder %s12, 0
      %p170 = por %p168, %p169
      %p171 = scmp.ne.s32.totalorder %s160, %s163
      %p172 = scmp.eq.s32.totalorder %s17, 1
      %p173 = por %p171, %p172
      %p174 = scmp.ne.s32.totalorder %s163, %s164
      %p175 = scmp.eq.s32.totalorder %s17, 0
      %p176 = por %p174, %p175
      %p177 = scmp.ne.s32.totalorder %s163, %s164
      %p178 = scmp.eq.s32.totalorder %s18, 1
      %p179 = por %p177, %p178
      %p181 = scmp.ne.s32.totalorder %s164, %s180
      %p182 = scmp.eq.s32.totalorder %s18, 0
      %p183 = por %p181, %p182
      %p184 = scmp.le.s32.totalorder 1, %s12
      %p185 = scmp.lt.s32.totalorder %s12, 3
      %p186 = pnand %p184, %p185
      %p187 = pneg %p186
      // Predicated region
      $region9: #{cause_rate_loss.1} parent=5 // pred_check
        _
      $region10: #{cause_rate_loss.1} parent=5 // pred_check_branch
        %189 = sbr.rel (%p186) target = $region12
      $region11: #{cause_rate_loss.1} parent=5 // pred_region
        %s190 = ssub.s32 %s12, 1
        // Predicated region
        $region13: #{cause_rate_loss.1} parent=11 // pred_check
          %p191 = pneg %p45
        $region14: #{cause_rate_loss.1} parent=11 // pred_check_branch
          %193 = sbr.rel (%p191) target = $region16
        $region15: #{cause_rate_loss.1} parent=11 // pred_region
          %s195 = ssub.s32 16, 16
          %196 = vsyncadd [#allocation4], %s195
          %s198 = sshll.u32 %s0, 4
          %s199 = int_to_ptr.vmem [resolvable:$true] %s198
          %201 = dma.vmem_to_smem %s199, 16, [#allocation3], [#allocation4]
        $region16: #{cause_rate_loss.1} parent=11 // pred_fallthru
          _
        // Predicated region
        $region17: #{cause_rate_loss.1} parent=11 // pred_check
          %p202 = pneg %p150
        $region18: #{cause_rate_loss.1} parent=11 // pred_check_branch
          %204 = sbr.rel (%p202) target = $region20
        $region19: #{cause_rate_loss.1} parent=11 // pred_region
          _
        $region20: #{cause_rate_loss.1} parent=11 // pred_fallthru
          _
      $region12: #{cause_rate_loss.1} parent=5 // pred_fallthru
        _
      %p205 = scmp.lt.s32.totalorder %s12, 2
      // Predicated region
      $region21: #{cause_rate_loss.1} parent=5 // pred_check
        %p206 = pneg %p205
      $region22: #{cause_rate_loss.1} parent=5 // pred_check_branch
        %208 = sbr.rel (%p206) target = $region24
      $region23: #{cause_rate_loss.1} parent=5 // pred_region
        // Predicated region
        $region25: #{cause_rate_loss.1} parent=23 // pred_check
          %p209 = pneg %p67
        $region26: #{cause_rate_loss.1} parent=23 // pred_check_branch
          %211 = sbr.rel (%p209) target = $region28
        $region27: #{cause_rate_loss.1} parent=23 // pred_region
          %s212 = sand.u32 %s57, 1
          %s213 = sand.u32 %s57, 1
          %s214 = smul.addr %s213, 32
          %s215 = scalar_lea.vmem [#allocation5], %s214
          %s216 = sadd.s32 %s19, %s20
          %s217 = smul.addr %s216, 8
          %s218 = scalar_lea.vmem %s1, %s217
          // Predicated region
          $region29: #{cause_rate_loss.1} parent=27 // pred_check
            _
          $region30: #{cause_rate_loss.1} parent=27 // pred_check_branch
            %220 = sbr.rel (0) target = $region32
          $region31: #{cause_rate_loss.1} parent=27 // pred_region
            // Predicated region
            $region33: #{cause_rate_loss.1} parent=31 // pred_check
              _
            $region34: #{cause_rate_loss.1} parent=31 // pred_check_branch
              %222 = sbr.rel (0) target = $region36
            $region35: #{cause_rate_loss.1} parent=31 // pred_region
              // Predicated region
              $region48: #{cause_rate_loss.1} parent=35 // pred_check
                _
              $region49: #{cause_rate_loss.1} parent=35 // pred_check_branch
                %243 = sbr.rel (0) target = $region51
              $region50: #{cause_rate_loss.1} parent=35 // pred_region
                loop: start=0, step=1, limit=1
                $region52: #{cause_rate_loss.1} parent=50 // loop_pre_header
                  _
                $region53: #{cause_rate_loss.1} parent=50 // loop_header
                  %s245 = sphi 0, %s249
                  %p246 = scmp.ge.s32.totalorder %s245, 1
                  %s250 = sphi %s218, %s218
                  %s251 = sphi %s215, %s215
                $region54: #{cause_rate_loss.1} parent=50 // loop_header_branch
                  %248 = sbr.rel (%p246) target = $region58
                $region55: #{cause_rate_loss.1} parent=50 // loop_body
                  %v252 = vld [vmem:[%s250] sm:$0xff]
                  %253 = vst [vmem:[%s251] sm:$0xff] %v252
                  %v254 = vld [vmem:[%s250 + $0x10] sm:$0xff]
                  %255 = vst [vmem:[%s251 + $0x8] sm:$0xff] %v254
                  %v256 = vld [vmem:[%s250 + $0x20] sm:$0xff]
                  %257 = vst [vmem:[%s251 + $0x10] sm:$0xff] %v256
                  %v258 = vld [vmem:[%s250 + $0x30] sm:$0xff]
                  %259 = vst [vmem:[%s251 + $0x18] sm:$0xff] %v258
                $region56: #{cause_rate_loss.1} parent=50 // loop_footer
                  %s249 = sadd.s32 1, %s245
                $region57: #{cause_rate_loss.1} parent=50 // loop_footer_branch
                  %244 = sbr.rel target = $region53
                $region58: #{cause_rate_loss.1} parent=50 // loop_exit
                  _
              $region51: #{cause_rate_loss.1} parent=35 // pred_fallthru
                _
              // Predicated region
              $region59: #{cause_rate_loss.1} parent=35 // pred_check
                _
              $region60: #{cause_rate_loss.1} parent=35 // pred_check_branch
                %261 = sbr.rel target = $region62
              $region61: #{cause_rate_loss.1} parent=35 // pred_region
                _
              $region62: #{cause_rate_loss.1} parent=35 // pred_fallthru
                _
            $region36: #{cause_rate_loss.1} parent=31 // pred_fallthru
              _
            // Predicated region
            $region37: #{cause_rate_loss.1} parent=31 // pred_check
              _
            $region38: #{cause_rate_loss.1} parent=31 // pred_check_branch
              %224 = sbr.rel target = $region40
            $region39: #{cause_rate_loss.1} parent=31 // pred_region
              loop: start=0, step=1, limit=1
              $region41: #{cause_rate_loss.1} parent=39 // loop_pre_header
                _
              $region42: #{cause_rate_loss.1} parent=39 // loop_header
                %s227 = sphi 0, %s231
                %p228 = scmp.ge.s32.totalorder %s227, 1
                %s232 = sphi %s218, %s218
                %s233 = sphi %s215, %s215
              $region43: #{cause_rate_loss.1} parent=39 // loop_header_branch
                %230 = sbr.rel (%p228) target = $region47
              $region44: #{cause_rate_loss.1} parent=39 // loop_body
                %v234 = vld [vmem:[%s232] sm:$0xff]
                %235 = vst [vmem:[%s233] sm:$0xff] %v234
                %v236 = vld [vmem:[%s232 + $0x10] sm:$0xff]
                %237 = vst [vmem:[%s233 + $0x8] sm:$0xff] %v236
                %v238 = vld [vmem:[%s232 + $0x20] sm:$0xff]
                %239 = vst [vmem:[%s233 + $0x10] sm:$0xff] %v238
                %v240 = vld [vmem:[%s232 + $0x30] sm:$0xff]
                %241 = vst [vmem:[%s233 + $0x18] sm:$0xff] %v240
              $region45: #{cause_rate_loss.1} parent=39 // loop_footer
                %s231 = sadd.s32 1, %s227
              $region46: #{cause_rate_loss.1} parent=39 // loop_footer_branch
                %226 = sbr.rel target = $region42
              $region47: #{cause_rate_loss.1} parent=39 // loop_exit
                _
            $region40: #{cause_rate_loss.1} parent=31 // pred_fallthru
              _
          $region32: #{cause_rate_loss.1} parent=27 // pred_fallthru
            _
          %262 = vnop
        $region28: #{cause_rate_loss.1} parent=23 // pred_fallthru
          _
        // Predicated region
        $region63: #{cause_rate_loss.1} parent=23 // pred_check
          %p263 = pneg %p95
        $region64: #{cause_rate_loss.1} parent=23 // pred_check_branch
          %265 = sbr.rel (%p263) target = $region66
        $region65: #{cause_rate_loss.1} parent=23 // pred_region
          %s266 = sand.u32 %s85, 1
          %s267 = sand.u32 %s85, 1
          %s268 = smul.addr %s267, 32
          %s269 = scalar_lea.vmem [#allocation6], %s268
          %s270 = sadd.s32 %s19, %s20
          %s271 = smul.addr %s270, 8
          %s272 = scalar_lea.vmem %s2, %s271
          // Predicated region
          $region67: #{cause_rate_loss.1} parent=65 // pred_check
            _
          $region68: #{cause_rate_loss.1} parent=65 // pred_check_branch
            %274 = sbr.rel (0) target = $region70
          $region69: #{cause_rate_loss.1} parent=65 // pred_region
            // Predicated region
            $region71: #{cause_rate_loss.1} parent=69 // pred_check
              _
            $region72: #{cause_rate_loss.1} parent=69 // pred_check_branch
              %276 = sbr.rel (0) target = $region74
            $region73: #{cause_rate_loss.1} parent=69 // pred_region
              // Predicated region
              $region86: #{cause_rate_loss.1} parent=73 // pred_check
                _
              $region87: #{cause_rate_loss.1} parent=73 // pred_check_branch
                %297 = sbr.rel (0) target = $region89
              $region88: #{cause_rate_loss.1} parent=73 // pred_region
                loop: start=0, step=1, limit=1
                $region90: #{cause_rate_loss.1} parent=88 // loop_pre_header
                  _
                $region91: #{cause_rate_loss.1} parent=88 // loop_header
                  %s299 = sphi 0, %s303
                  %p300 = scmp.ge.s32.totalorder %s299, 1
                  %s304 = sphi %s272, %s272
                  %s305 = sphi %s269, %s269
                $region92: #{cause_rate_loss.1} parent=88 // loop_header_branch
                  %302 = sbr.rel (%p300) target = $region96
                $region93: #{cause_rate_loss.1} parent=88 // loop_body
                  %v306 = vld [vmem:[%s304] sm:$0xff]
                  %307 = vst [vmem:[%s305] sm:$0xff] %v306
                  %v308 = vld [vmem:[%s304 + $0x10] sm:$0xff]
                  %309 = vst [vmem:[%s305 + $0x8] sm:$0xff] %v308
                  %v310 = vld [vmem:[%s304 + $0x20] sm:$0xff]
                  %311 = vst [vmem:[%s305 + $0x10] sm:$0xff] %v310
                  %v312 = vld [vmem:[%s304 + $0x30] sm:$0xff]
                  %313 = vst [vmem:[%s305 + $0x18] sm:$0xff] %v312
                $region94: #{cause_rate_loss.1} parent=88 // loop_footer
                  %s303 = sadd.s32 1, %s299
                $region95: #{cause_rate_loss.1} parent=88 // loop_footer_branch
                  %298 = sbr.rel target = $region91
                $region96: #{cause_rate_loss.1} parent=88 // loop_exit
                  _
              $region89: #{cause_rate_loss.1} parent=73 // pred_fallthru
                _
              // Predicated region
              $region97: #{cause_rate_loss.1} parent=73 // pred_check
                _
              $region98: #{cause_rate_loss.1} parent=73 // pred_check_branch
                %315 = sbr.rel target = $region100
              $region99: #{cause_rate_loss.1} parent=73 // pred_region
                _
              $region100: #{cause_rate_loss.1} parent=73 // pred_fallthru
                _
            $region74: #{cause_rate_loss.1} parent=69 // pred_fallthru
              _
            // Predicated region
            $region75: #{cause_rate_loss.1} parent=69 // pred_check
              _
            $region76: #{cause_rate_loss.1} parent=69 // pred_check_branch
              %278 = sbr.rel target = $region78
            $region77: #{cause_rate_loss.1} parent=69 // pred_region
              loop: start=0, step=1, limit=1
              $region79: #{cause_rate_loss.1} parent=77 // loop_pre_header
                _
              $region80: #{cause_rate_loss.1} parent=77 // loop_header
                %s281 = sphi 0, %s285
                %p282 = scmp.ge.s32.totalorder %s281, 1
                %s286 = sphi %s272, %s272
                %s287 = sphi %s269, %s269
              $region81: #{cause_rate_loss.1} parent=77 // loop_header_branch
                %284 = sbr.rel (%p282) target = $region85
              $region82: #{cause_rate_loss.1} parent=77 // loop_body
                %v288 = vld [vmem:[%s286] sm:$0xff]
                %289 = vst [vmem:[%s287] sm:$0xff] %v288
                %v290 = vld [vmem:[%s286 + $0x10] sm:$0xff]
                %291 = vst [vmem:[%s287 + $0x8] sm:$0xff] %v290
                %v292 = vld [vmem:[%s286 + $0x20] sm:$0xff]
                %293 = vst [vmem:[%s287 + $0x10] sm:$0xff] %v292
                %v294 = vld [vmem:[%s286 + $0x30] sm:$0xff]
                %295 = vst [vmem:[%s287 + $0x18] sm:$0xff] %v294
              $region83: #{cause_rate_loss.1} parent=77 // loop_footer
                %s285 = sadd.s32 1, %s281
              $region84: #{cause_rate_loss.1} parent=77 // loop_footer_branch
                %280 = sbr.rel target = $region80
              $region85: #{cause_rate_loss.1} parent=77 // loop_exit
                _
            $region78: #{cause_rate_loss.1} parent=69 // pred_fallthru
              _
          $region70: #{cause_rate_loss.1} parent=65 // pred_fallthru
            _
          %316 = vnop
        $region66: #{cause_rate_loss.1} parent=23 // pred_fallthru
          _
        // Predicated region
        $region101: #{cause_rate_loss.1} parent=23 // pred_check
          %p317 = pneg %p123
        $region102: #{cause_rate_loss.1} parent=23 // pred_check_branch
          %319 = sbr.rel (%p317) target = $region104
        $region103: #{cause_rate_loss.1} parent=23 // pred_region
          %s320 = sadd.s32 %s19, %s20
          %p321 = scmp.lt.s32.totalorder %s320, 1
          %s322 = scalar_select %p321, %s320, 1
          %s323 = smul.addr %s322, 4
          %s324 = scalar_lea.vmem %s3, %s323
          %s325 = sadd.s32 %s19, %s20
        $region104: #{cause_rate_loss.1} parent=23 // pred_fallthru
          _
      $region24: #{cause_rate_loss.1} parent=5 // pred_fallthru
        _
      %p326 = scmp.le.s32.totalorder 1, %s12
      %p327 = scmp.lt.s32.totalorder %s12, 3
      %p328 = pnand %p326, %p327
      %p329 = pneg %p328
      // Predicated region
      $region105: #{cause_rate_loss.1} parent=5 // pred_check
        _
      $region106: #{cause_rate_loss.1} parent=5 // pred_check_branch
        %331 = sbr.rel (%p328) target = $region108
      $region107: #{cause_rate_loss.1} parent=5 // pred_region
        %s332 = ssub.s32 %s12, 1
        // Predicated region
        $region109: #{cause_rate_loss.1} parent=107 // pred_check
          %p333 = pneg %p45
        $region110: #{cause_rate_loss.1} parent=107 // pred_check_branch
          %335 = sbr.rel (%p333) target = $region112
        $region111: #{cause_rate_loss.1} parent=107 // pred_region
          %336 = dma.done [#allocation4], 16
        $region112: #{cause_rate_loss.1} parent=107 // pred_fallthru
          _
        %s337 = sand.u32 %s60, 1
        %s338 = sand.u32 %s60, 1
        %s339 = smul.addr %s338, 32
        %s340 = scalar_lea.vmem [#allocation5], %s339
        // Predicated region
        $region113: #{cause_rate_loss.1} parent=107 // pred_check
          %p341 = pneg %p73
        $region114: #{cause_rate_loss.1} parent=107 // pred_check_branch
          %343 = sbr.rel (%p341) target = $region116
        $region115: #{cause_rate_loss.1} parent=107 // pred_region
          _
        $region116: #{cause_rate_loss.1} parent=107 // pred_fallthru
          _
        %s344 = sand.u32 %s88, 1
        %s345 = sand.u32 %s88, 1
        %s346 = smul.addr %s345, 32
        %s347 = scalar_lea.vmem [#allocation6], %s346
        // Predicated region
        $region117: #{cause_rate_loss.1} parent=107 // pred_check
          %p348 = pneg %p101
        $region118: #{cause_rate_loss.1} parent=107 // pred_check_branch
          %350 = sbr.rel (%p348) target = $region120
        $region119: #{cause_rate_loss.1} parent=107 // pred_region
          _
        $region120: #{cause_rate_loss.1} parent=107 // pred_fallthru
          _
        %351 = sfence
        %p352 = pneg %p45
        %p353 = pneg %p42
        %s354 = sand.u32 %s60, 1
        %s355 = sand.u32 %s60, 1
        %s356 = smul.addr %s355, 32
        %s357 = scalar_lea.vmem [#allocation5], %s356
        %p358 = pneg %p73
        %p359 = pneg %p70
        %s360 = sand.u32 %s88, 1
        %s361 = sand.u32 %s88, 1
        %s362 = smul.addr %s361, 32
        %s363 = scalar_lea.vmem [#allocation6], %s362
        %p364 = pneg %p101
        %p365 = pneg %p98
        %s366 = sadd.s32 %s21, %s22
        %p367 = scmp.lt.s32.totalorder %s366, 1
        %s368 = scalar_select %p367, %s366, 1
        %s369 = smul.addr %s368, 4
        %s370 = scalar_lea.vmem %s3, %s369
        %p371 = pneg %p129
        %p372 = pneg %p126
        %p373 = pneg %p150
        %p374 = pneg %p147
        %p375 = pneg %p176
        %p376 = pneg %p173
        %p377 = scmp.lt.s32.totalorder %s21, 1
        %s378 = scalar_select %p377, %s21, 1
        %s379 = smul.addr %s378, 8
        %s380 = scalar_lea.vmem %s5, %s379
        %s381 = sadd.s32 %s21, %s22
        %s382 = sadd.s32 %s21, %s22
        %s383 = sadd.s32 %s21, %s22
        %p384 = scmp.lt.s32.totalorder %s383, 1
        %s385 = scalar_select %p384, %s383, 1
        %s386 = smul.addr %s385, 4
        %s387 = scalar_lea.vmem %s3, %s386
        %s388 = sadd.s32 %s21, %s22
        %p389 = scmp.lt.s32.totalorder %s21, 1
        %s390 = scalar_select %p389, %s21, 1
        %s391 = smul.addr %s390, 8
        %s392 = scalar_lea.vmem %s5, %s391
        %s393 = sld [smem:[#allocation3]]
        %s394 = sld [smem:[#allocation3 + $0x1]]
        %s395 = sld [smem:[#allocation3 + $0x2]]
        %s396 = scvt.f32.s32.to.zero.pseudo %s395
        %p397 = scmp.eq.s32.totalorder %s22, 0
        // Predicated region
        $region121: #{cause_rate_loss.1} parent=107 // pred_check
          %p398 = pneg %p397
        $region122: #{cause_rate_loss.1} parent=107 // pred_check_branch
          %400 = sbr.rel (%p398) target = $region124
        $region123: #{cause_rate_loss.1} parent=107 // pred_region
          %401 = vst [vmem:[%s392] sm:$0xff] 0.0
          %v402 = vld [vmem:[%s4] sm:$0xff]
          %v403 = vld [vmem:[%s4 + $0x8] sm:$0xff]
          %v404 = vld [vmem:[%s4 + $0x10] sm:$0xff]
          %v405 = vld [vmem:[%s4 + $0x18] sm:$0xff]
          %v406 = vmul.f32 %v402, %v402
          %v407 = vmul.f32 %v403, %v403
          %v408 = vmul.f32 %v404, %v404
          %v409 = vmul.f32 %v405, %v405
          %vm410 = vcmask 7168
          %v411 = vsel %vm410, %v406, 0.0
          %v412 = vsel %vm410, %v407, 0.0
          %v413 = vadd.f32 %v411, %v412
          %v414 = vsel %vm410, %v408, 0.0
          %v415 = vadd.f32 %v413, %v414
          %v416 = vsel %vm410, %v409, 0.0
          %v417 = vadd.f32 %v415, %v416
          %v418 = vrot.slane %v417, 4
          %v419 = vadd.f32 %v417, %v418
          %v420 = vrot.slane %v419, 2
          %v421 = vadd.f32 %v419, %v420
          %v422 = vrot.slane %v421, 1
          %v423 = vadd.f32 %v421, %v422
          %v424 = vmax.f32 %v423, 1e-24
          %v425 = vrsqrt.pop %v424
          %v426 = vmul.f32 %v402, %v425
          %v427 = vmul.f32 %v403, %v425
          %v428 = vmul.f32 %v404, %v425
          %v429 = vmul.f32 %v405, %v425
          %430 = vst.msk [vmem:[#allocation2] sm:$0xff] %vm410, %v426
          %431 = vst.msk [vmem:[#allocation2 + $0x8] sm:$0xff] %vm410, %v427
          %432 = vst.msk [vmem:[#allocation2 + $0x10] sm:$0xff] %vm410, %v428
          %433 = vst.msk [vmem:[#allocation2 + $0x18] sm:$0xff] %vm410, %v429
        $region124: #{cause_rate_loss.1} parent=107 // pred_fallthru
          _
        %v434 = vld [vmem:[%s340] sm:$0xff]
        %v435 = vld [vmem:[%s340 + $0x8] sm:$0xff]
        %v436 = vld [vmem:[%s340 + $0x10] sm:$0xff]
        %v437 = vld [vmem:[%s340 + $0x18] sm:$0xff]
        %v438 = vld [vmem:[%s347] sm:$0xff]
        %v439 = vld [vmem:[%s347 + $0x8] sm:$0xff]
        %v440 = vld [vmem:[%s347 + $0x10] sm:$0xff]
        %v441 = vld [vmem:[%s347 + $0x18] sm:$0xff]
        %v442 = vld [vmem:[%s387] sm:$0x1]
        %v443 = vld [vmem:[%s387 + $0x1] sm:$0x1]
        %v444 = vld [vmem:[%s387 + $0x2] sm:$0x1]
        %s445 = sadd.s32 %s21, %s22
        %s446 = smul.u32 %s445, 128
        %v447 = vlaneseq
        %v448 = vand.u32 %v447, 127
        %v449 = vstv %s446
        %v450 = vadd.s32 %v449, %v448
        %v451 = vstv %s396
        %vm452 = vcmp.lt.s32.totalorder %v450, %v451
        %v453 = vmul.f32 %v434, %v434
        %v454 = vmul.f32 %v435, %v435
        %v455 = vmul.f32 %v436, %v436
        %v456 = vmul.f32 %v437, %v437
        %v457 = vadd.f32 %v453, %v454
        %v458 = vadd.f32 %v457, %v455
        %v459 = vadd.f32 %v458, %v456
        %v460 = vrot.slane %v459, 4
        %v461 = vadd.f32 %v459, %v460
        %v462 = vrot.slane %v461, 2
        %v463 = vadd.f32 %v461, %v462
        %v464 = vrot.slane %v463, 1
        %v465 = vadd.f32 %v463, %v464
        %v466 = vmul.f32 %v438, %v438
        %v467 = vmul.f32 %v439, %v439
        %v468 = vmul.f32 %v440, %v440
        %v469 = vmul.f32 %v441, %v441
        %v470 = vadd.f32 %v466, %v467
        %v471 = vadd.f32 %v470, %v468
        %v472 = vadd.f32 %v471, %v469
        %v473 = vrot.slane %v472, 4
        %v474 = vadd.f32 %v472, %v473
        %v475 = vrot.slane %v474, 2
        %v476 = vadd.f32 %v474, %v475
        %v477 = vrot.slane %v476, 1
        %v478 = vadd.f32 %v476, %v477
        %v479 = vmul.f32 %v434, %v438
        %v480 = vmul.f32 %v435, %v439
        %v481 = vmul.f32 %v436, %v440
        %v482 = vmul.f32 %v437, %v441
        %v483 = vadd.f32 %v479, %v480
        %v484 = vadd.f32 %v483, %v481
        %v485 = vadd.f32 %v484, %v482
        %v486 = vrot.slane %v485, 4
        %v487 = vadd.f32 %v485, %v486
        %v488 = vrot.slane %v487, 2
        %v489 = vadd.f32 %v487, %v488
        %v490 = vrot.slane %v489, 1
        %v491 = vadd.f32 %v489, %v490
        %v492 = vstv %s393
        %v493 = vmul.f32 %v492, %v491
        %v494 = vadd.f32 %v493, %v442
        %v495 = vadd.f32 %v494, %v443
        %v496 = vstv %s394
        %v497 = vadd.f32 %v495, %v496
        %v498 = vxor.u32 %v497, 2147483648
        %v499 = vmul.f32 %v498, 1.442695
        %v500 = vpow.pop %v499
        %v501 = vadd.f32 %v500, 1.0
        %v502 = vrcp.pop %v501
        %v503 = vmul.f32 1.0, %v502
        %v504 = vsub.f32 %v444, 1.0
        %v505 = vmul.f32 %v504, 0.25
        %v506 = vsub.f32 %v503, %v505
        %v507 = vmul.f32 %v506, %v506
        %v508 = vsel %vm452, %v507, 0.0
        %v509 = vsel %vm452, %v465, 0.0
        %v510 = vsel %vm452, %v478, 0.0
        %v511 = vmul.f32 %v442, %v442
        %v512 = vsel %vm452, %v511, 0.0
        %v513 = vmul.f32 %v443, %v443
        %v514 = vsel %vm452, %v513, 0.0
        %v515 = vld [vmem:[#allocation2] sm:$0xff]
        %v516 = vld [vmem:[#allocation2 + $0x8] sm:$0xff]
        %v517 = vld [vmem:[#allocation2 + $0x10] sm:$0xff]
        %v518 = vld [vmem:[#allocation2 + $0x18] sm:$0xff]
        %v519 = vmax.f32 %v478, 1e-24
        %v520 = vrsqrt.pop %v519
        %522 = vset.pattern.permute.xlu0 0
        %523 = vperm.xlu0 %522, %v515
        %v524 = vpop.permute.xlu0 %523
        %527 = vset.pattern.permute.xlu0 0
        %528 = vperm.xlu0 %527, %v516
        %v529 = vpop.permute.xlu0 %528
        %532 = vset.pattern.permute.xlu0 0
        %533 = vperm.xlu0 %532, %v517
        %v534 = vpop.permute.xlu0 %533
        %537 = vset.pattern.permute.xlu0 0
        %538 = vperm.xlu0 %537, %v518
        %v539 = vpop.permute.xlu0 %538
        %v541 = vmul.f32 %v438, %v524
        %v542 = vmul.f32 %v439, %v529
        %v543 = vmul.f32 %v440, %v534
        %v544 = vmul.f32 %v441, %v539
        %v545 = vadd.f32 %v541, %v542
        %v546 = vadd.f32 %v545, %v543
        %v547 = vadd.f32 %v546, %v544
        %v548 = vrot.slane %v547, 4
        %v549 = vadd.f32 %v547, %v548
        %v550 = vrot.slane %v549, 2
        %v551 = vadd.f32 %v549, %v550
        %v552 = vrot.slane %v551, 1
        %v553 = vadd.f32 %v551, %v552
        %v554 = vmul.f32 %v553, %v520
        %v555 = vmul.f32 %v515, %v515
        %v556 = vmul.f32 %v516, %v516
        %v557 = vmul.f32 %v517, %v517
        %v558 = vmul.f32 %v518, %v518
        %vm559 = vcmask 7168
        %v560 = vsel %vm559, %v555, 0.0
        %v561 = vsel %vm559, %v556, 0.0
        %v562 = vadd.f32 %v560, %v561
        %v563 = vsel %vm559, %v557, 0.0
        %v564 = vadd.f32 %v562, %v563
        %v565 = vsel %vm559, %v558, 0.0
        %v566 = vadd.f32 %v564, %v565
        %v567 = vrot.slane %v566, 4
        %v568 = vadd.f32 %v566, %v567
        %v569 = vrot.slane %v568, 2
        %v570 = vadd.f32 %v568, %v569
        %v571 = vrot.slane %v570, 1
        %v572 = vadd.f32 %v570, %v571
        %v573 = vmul.f32 %v520, %v520
        %v574 = vmul.f32 %v478, %v573
        %576 = vset.pattern.permute.xlu0 0
        %577 = vperm.xlu0 %576, %v572
        %v578 = vpop.permute.xlu0 %577
        %v580 = vadd.f32 %v574, %v578
        %v581 = vmul.f32 %v554, 2.0
        %v582 = vsub.f32 %v580, %v581
        %v583 = vsel %vm452, %v582, 0.0
        %v584 = vld [vmem:[%s392] sm:$0x1]
        %v585 = vadd.f32 %v584, %v508
        %586 = vst [vmem:[%s392] sm:$0x1] %v585
        %v587 = vld [vmem:[%s392 + $0x1] sm:$0x1]
        %v588 = vadd.f32 %v587, %v509
        %589 = vst [vmem:[%s392 + $0x1] sm:$0x1] %v588
        %v590 = vld [vmem:[%s392 + $0x2] sm:$0x1]
        %v591 = vadd.f32 %v590, %v510
        %592 = vst [vmem:[%s392 + $0x2] sm:$0x1] %v591
        %v593 = vld [vmem:[%s392 + $0x3] sm:$0x1]
        %v594 = vadd.f32 %v593, %v512
        %595 = vst [vmem:[%s392 + $0x3] sm:$0x1] %v594
        %v596 = vld [vmem:[%s392 + $0x4] sm:$0x1]
        %v597 = vadd.f32 %v596, %v514
        %598 = vst [vmem:[%s392 + $0x4] sm:$0x1] %v597
        %v599 = vld [vmem:[%s392 + $0x5] sm:$0x1]
        %v600 = vadd.f32 %v599, %v583
        %601 = vst [vmem:[%s392 + $0x5] sm:$0x1] %v600
        %p602 = scmp.lt.s32.totalorder %s21, 1
        %s603 = scalar_select %p602, %s21, 1
        %s604 = smul.addr %s603, 8
        %s605 = scalar_lea.vmem %s5, %s604
        // Predicated region
        $region125: #{cause_rate_loss.1} parent=107 // pred_check
          %p606 = pneg %p173
        $region126: #{cause_rate_loss.1} parent=107 // pred_check_branch
          %608 = sbr.rel (%p606) target = $region128
        $region127: #{cause_rate_loss.1} parent=107 // pred_region
          _
        $region128: #{cause_rate_loss.1} parent=107 // pred_fallthru
          _
      $region108: #{cause_rate_loss.1} parent=5 // pred_fallthru
        _
      %p609 = scmp.le.s32.totalorder 2, %s12
      // Predicated region
      $region129: #{cause_rate_loss.1} parent=5 // pred_check
        %p610 = pneg %p609
      $region130: #{cause_rate_loss.1} parent=5 // pred_check_branch
        %612 = sbr.rel (%p610) target = $region132
      $region131: #{cause_rate_loss.1} parent=5 // pred_region
        %s613 = ssub.s32 %s12, 2
        // Predicated region
        $region133: #{cause_rate_loss.1} parent=131 // pred_check
          %p614 = pneg %p179
        $region134: #{cause_rate_loss.1} parent=131 // pred_check_branch
          %616 = sbr.rel (%p614) target = $region136
        $region135: #{cause_rate_loss.1} parent=131 // pred_region
          %p617 = scmp.lt.s32.totalorder %s23, 1
          %s618 = scalar_select %p617, %s23, 1
          %s619 = smul.addr %s618, 8
          %s620 = scalar_lea.vmem %s5, %s619
        $region136: #{cause_rate_loss.1} parent=131 // pred_fallthru
          _
      $region132: #{cause_rate_loss.1} parent=5 // pred_fallthru
        _
    $region6: #{cause_rate_loss.1} parent=1 // loop_footer
      %s16 = sadd.s32 1, %s12
    $region7: #{cause_rate_loss.1} parent=1 // loop_footer_branch
      %11 = sbr.rel target = $region3
    $region8: #{cause_rate_loss.1} parent=1 // loop_exit
      _
    %621 = vsyncpa [#allocation4], 1
    %s622 = scalar_lea.sflag [#allocation4], 1
    %623 = vsyncpa %s622, 1

</llo_original>
